<compile_context>
chip_gen: v7x
topology: tpu7x:2x2x1
jax: 0.10.0
libtpu: 0.0.40
codegen_flags: <defaults>
</compile_context>

<pallas_src>
import functools

import jax
import jax.numpy as jnp
from jax.experimental import pallas as pl
from jax.experimental.pallas import tpu as pltpu
from jax.scipy.linalg import block_diag

PACK = 8  # rows packed side-by-side along the lane axis (PACK * out_dim == 128)


def _cdiv(a, b):
    return -(-a // b)


def _round_up(a, b):
    return _cdiv(a, b) * b


def _num_tensorcores():
    """Best-effort TensorCore count per device (2 on v7x, else 1)."""
    try:
        kind = jax.devices()[0].device_kind.lower()
    except Exception:
        return 1
    return 2 if ("v7" in kind or "tpu7" in kind) else 1


def linear_skip_kernel(x_ref, w0_ref, b0_ref, w1_ref, b1_ref, w2_ref, b2_ref,
                       o_ref):
    # x_ref holds tile_r "packed" rows; each packed row carries PACK original
    # rows laid out contiguously along the lane axis.  The block-diagonal
    # weights make the packed matmul exactly equal to the per-row MLP.
    # Elementwise math (bias/relu/skip) stays f32; only the MXU operands are
    # cast to the (bf16) weight dtype, with f32 accumulation.
    x = x_ref[...].astype(jnp.float32)

    h = jnp.dot(x.astype(w0_ref.dtype), w0_ref[...],
                preferred_element_type=jnp.float32)
    h = jnp.maximum(h + b0_ref[...], 0.0)       # relu; dropout(p=0) = identity
    x = h + x                                   # skip == "sum"

    h = jnp.dot(x.astype(w1_ref.dtype), w1_ref[...],
                preferred_element_type=jnp.float32)
    h = jnp.maximum(h + b1_ref[...], 0.0)
    x = h + x                                   # skip == "sum"

    out = jnp.dot(x.astype(w2_ref.dtype), w2_ref[...],
                  preferred_element_type=jnp.float32)
    out = jnp.maximum(out + b2_ref[...], 0.0)   # last activation, no skip
    o_ref[...] = out.astype(o_ref.dtype)


def pack_params(w0, b0, w1, b1, w2, b2, *, matmul_dtype=jnp.bfloat16):
    """One-time (model-load) packing of weights/biases for the packed kernel.

    Weights are (in, out) -- i.e. transposed vs torch.nn.Linear.weight.  Each
    weight is replicated block-diagonally PACK times (lane-dense packing) and
    pre-cast to the MXU operand dtype; biases are tiled along lanes in f32.
    """
    def one(w, b):
        wp = block_diag(*([w] * PACK)).astype(matmul_dtype)       # (8*in, 8*out)
        bp = jnp.tile(jnp.reshape(b, (1, -1)), (1, PACK))         # (1, 8*out) f32
        return wp, bp.astype(jnp.float32)

    w0p, b0p = one(w0, b0)
    w1p, b1p = one(w1, b1)
    w2p, b2p = one(w2, b2)
    return (w0p, b0p, w1p, b1p, w2p, b2p)


@functools.partial(jax.jit, static_argnames=("tile_n",))
def linear_skip_block(x, packed_params, *, tile_n=8192):
    """Forward pass of LinearSkipBlock (skip='sum', relu activations).

    x: (N, D) in f32 or bf16 (bf16 halves the dominant HBM read).
    packed_params: output of pack_params(), computed once at model load.
    """
    w0p, b0p, w1p, b1p, w2p, b2p = packed_params
    N, D = x.shape
    H0 = w0p.shape[1] // PACK
    H1 = w1p.shape[1] // PACK
    OUT = w2p.shape[1] // PACK
    # skip == "sum" requires every hidden width to equal the input width.
    assert D == H0 == H1, "skip='sum' needs hidden_dim == input feature dim"
    assert (PACK * D) % 128 == 0 and (PACK * OUT) % 128 == 0, "lane packing"

    # Pad only to a multiple of PACK rows (no-op when N % 8 == 0), then do the
    # free row-major repack to a lane-dense (rows, 256) slab.
    rows = _cdiv(N, PACK)
    Np = rows * PACK
    xp = x if Np == N else jnp.pad(x, ((0, Np - N), (0, 0)))
    x2 = xp.reshape(rows, PACK * D)

    # Tile selection: big tiles amortize per-step overhead; only chips with
    # two TensorCores (v7x) force a >=2-step balanced grid for megacore.
    tile_r = max(8, _round_up(tile_n // PACK, 8))
    n_tc = _num_tensorcores()
    if n_tc > 1:
        tile_r = min(tile_r, max(8, _round_up(_cdiv(rows, n_tc), 8)))
    tile_r = min(tile_r, _round_up(rows, 8))
    grid = (_cdiv(rows, tile_r),)

    const = lambda i: (0, 0)                     # VMEM-resident, fetched once
    out_packed = pl.pallas_call(
        linear_skip_kernel,
        out_shape=jax.ShapeDtypeStruct((rows, PACK * OUT), x.dtype),
        grid=grid,
        in_specs=[
            pl.BlockSpec((tile_r, PACK * D), lambda i: (i, 0)),    # x tile
            pl.BlockSpec((PACK * D, PACK * H0), const),            # W0 (bf16)
            pl.BlockSpec((1, PACK * H0), const),                   # b0 (f32)
            pl.BlockSpec((PACK * H0, PACK * H1), const),           # W1 (bf16)
            pl.BlockSpec((1, PACK * H1), const),                   # b1 (f32)
            pl.BlockSpec((PACK * H1, PACK * OUT), const),          # W2 (bf16)
            pl.BlockSpec((1, PACK * OUT), const),                  # b2 (f32)
        ],
        out_specs=pl.BlockSpec((tile_r, PACK * OUT), lambda i: (i, 0)),
        compiler_params=pltpu.CompilerParams(
            dimension_semantics=("parallel",),
            vmem_limit_bytes=32 * 1024 * 1024),
    )(x2, w0p, b0p, w1p, b1p, w2p, b2p)

    # Free reshape back to (Np, OUT); slice only when a tail pad was needed.
    out = out_packed.reshape(Np, OUT)
    return out if Np == N else out[:N]


def reference_forward(x, w0, b0, w1, b1, w2, b2):
    """Plain-JAX mirror of LinearSkipBlock.forward (skip='sum', relu acts)."""
    xf = x.astype(jnp.float32)
    h = jax.nn.relu(xf @ w0 + b0)
    xf = h + xf
    h = jax.nn.relu(xf @ w1 + b1)
    xf = h + xf
    return jax.nn.relu(xf @ w2 + b2)


if __name__ == "__main__":
    # Small shapes: 1000 "nodes" (not a multiple of the row tile), 32 input
    # features, hidden [32, 32], out 16.
    N, D = 1000, 32
    H0, H1, OUT = 32, 32, 16

    key = jax.random.PRNGKey(0)
    kx, k0, kb0, k1, kb1, k2, kb2 = jax.random.split(key, 7)

    x = jax.random.normal(kx, (N, D), jnp.float32)
    w0 = jax.random.normal(k0, (D, H0), jnp.float32) * (1.0 / D) ** 0.5
    b0 = jax.random.normal(kb0, (H0,), jnp.float32) * 0.01
    w1 = jax.random.normal(k1, (H0, H1), jnp.float32) * (1.0 / H0) ** 0.5
    b1 = jax.random.normal(kb1, (H1,), jnp.float32) * 0.01
    w2 = jax.random.normal(k2, (H1, OUT), jnp.float32) * (1.0 / H1) ** 0.5
    b2 = jax.random.normal(kb2, (OUT,), jnp.float32) * 0.01

    # One-time weight packing (hoisted out of the per-call hot path).
    packed = pack_params(w0, b0, w1, b1, w2, b2, matmul_dtype=jnp.bfloat16)

    # f32 input path: bf16 MXU operands + f32 accumulation -> relaxed tolerance.
    out = jax.block_until_ready(linear_skip_block(x, packed))
    ref = reference_forward(x, w0, b0, w1, b1, w2, b2)
    assert out.shape == (N, OUT)
    assert jnp.allclose(out, ref, atol=5e-2, rtol=5e-2), "mismatch vs reference"

    # bf16 HBM-side input (bandwidth optimization); elementwise math stays f32.
    out_bf16 = jax.block_until_ready(
        linear_skip_block(x.astype(jnp.bfloat16), packed))
    ref_bf16 = reference_forward(
        x.astype(jnp.bfloat16).astype(jnp.float32), w0, b0, w1, b1, w2, b2)
    assert out_bf16.shape == (N, OUT)
    assert jnp.allclose(out_bf16.astype(jnp.float32), ref_bf16,
                        atol=0.1, rtol=0.1), "bf16-input mismatch"

    print("KERNEL_OK")
</pallas_src>

<mosaic_0001>
module attributes {stable_mosaic.version = 11 : i64} {
  func.func @linear_skip_kernel(%arg0: i32, %arg1: memref<128x256xf32, #tpu.memory_space<vmem>>, %arg2: memref<256x256xbf16, #tpu.memory_space<vmem>>, %arg3: memref<1x256xf32, #tpu.memory_space<vmem>>, %arg4: memref<256x256xbf16, #tpu.memory_space<vmem>>, %arg5: memref<1x256xf32, #tpu.memory_space<vmem>>, %arg6: memref<256x128xbf16, #tpu.memory_space<vmem>>, %arg7: memref<1x128xf32, #tpu.memory_space<vmem>>, %arg8: memref<128x128xf32, #tpu.memory_space<vmem>>) attributes {dimension_semantics = [#tpu.dimension_semantics<parallel>], iteration_bounds = array<i64: 1>, scalar_prefetch = 0 : i64, scratch_operands = 0 : i64, tpu.core_type = #tpu.core_type<tc>, window_params = [{transform_indices = @transform_0, window_bounds = array<i64: 128, 256>}, {pipeline_mode = #tpu.pipeline_mode<synchronous>, transform_indices = @transform_1, window_bounds = array<i64: 256, 256>}, {pipeline_mode = #tpu.pipeline_mode<synchronous>, transform_indices = @transform_2, window_bounds = array<i64: 1, 256>}, {pipeline_mode = #tpu.pipeline_mode<synchronous>, transform_indices = @transform_3, window_bounds = array<i64: 256, 256>}, {pipeline_mode = #tpu.pipeline_mode<synchronous>, transform_indices = @transform_4, window_bounds = array<i64: 1, 256>}, {pipeline_mode = #tpu.pipeline_mode<synchronous>, transform_indices = @transform_5, window_bounds = array<i64: 256, 128>}, {pipeline_mode = #tpu.pipeline_mode<synchronous>, transform_indices = @transform_6, window_bounds = array<i64: 1, 128>}, {transform_indices = @transform_7, window_bounds = array<i64: 128, 128>}]} {
    %c0 = arith.constant 0 : index
    %c0_0 = arith.constant 0 : index
    %0 = vector.load %arg1[%c0, %c0_0] : memref<128x256xf32, #tpu.memory_space<vmem>>, vector<128x256xf32>
    %1 = arith.truncf %0 : vector<128x256xf32> to vector<128x256xbf16>
    %c0_1 = arith.constant 0 : index
    %c0_2 = arith.constant 0 : index
    %2 = vector.load %arg2[%c0_1, %c0_2] : memref<256x256xbf16, #tpu.memory_space<vmem>>, vector<256x256xbf16>
    %cst = arith.constant dense<0.000000e+00> : vector<128x256xf32>
    %3 = tpu.matmul %1, %2, %cst {dimension_numbers = #tpu.dot_dimension_numbers<[1], [0], [0], [1], [0, 0, 1, 1], [], []>} : vector<128x256xbf16>, vector<256x256xbf16>, vector<128x256xf32> -> vector<128x256xf32>
    %c0_3 = arith.constant 0 : index
    %c0_4 = arith.constant 0 : index
    %4 = vector.load %arg3[%c0_3, %c0_4] : memref<1x256xf32, #tpu.memory_space<vmem>>, vector<1x256xf32>
    %5 = vector.broadcast %4 : vector<1x256xf32> to vector<128x256xf32>
    %6 = arith.addf %3, %5 : vector<128x256xf32>
    %cst_5 = arith.constant 0.000000e+00 : f32
    %7 = vector.broadcast %cst_5 : f32 to vector<128x256xf32>
    %8 = arith.maximumf %6, %7 : vector<128x256xf32>
    %9 = arith.addf %8, %0 : vector<128x256xf32>
    %10 = arith.truncf %9 : vector<128x256xf32> to vector<128x256xbf16>
    %c0_6 = arith.constant 0 : index
    %c0_7 = arith.constant 0 : index
    %11 = vector.load %arg4[%c0_6, %c0_7] : memref<256x256xbf16, #tpu.memory_space<vmem>>, vector<256x256xbf16>
    %cst_8 = arith.constant dense<0.000000e+00> : vector<128x256xf32>
    %12 = tpu.matmul %10, %11, %cst_8 {dimension_numbers = #tpu.dot_dimension_numbers<[1], [0], [0], [1], [0, 0, 1, 1], [], []>} : vector<128x256xbf16>, vector<256x256xbf16>, vector<128x256xf32> -> vector<128x256xf32>
    %c0_9 = arith.constant 0 : index
    %c0_10 = arith.constant 0 : index
    %13 = vector.load %arg5[%c0_9, %c0_10] : memref<1x256xf32, #tpu.memory_space<vmem>>, vector<1x256xf32>
    %14 = vector.broadcast %13 : vector<1x256xf32> to vector<128x256xf32>
    %15 = arith.addf %12, %14 : vector<128x256xf32>
    %cst_11 = arith.constant 0.000000e+00 : f32
    %16 = vector.broadcast %cst_11 : f32 to vector<128x256xf32>
    %17 = arith.maximumf %15, %16 : vector<128x256xf32>
    %18 = arith.addf %17, %9 : vector<128x256xf32>
    %19 = arith.truncf %18 : vector<128x256xf32> to vector<128x256xbf16>
    %c0_12 = arith.constant 0 : index
    %c0_13 = arith.constant 0 : index
    %20 = vector.load %arg6[%c0_12, %c0_13] : memref<256x128xbf16, #tpu.memory_space<vmem>>, vector<256x128xbf16>
    %cst_14 = arith.constant dense<0.000000e+00> : vector<128x128xf32>
    %21 = tpu.matmul %19, %20, %cst_14 {dimension_numbers = #tpu.dot_dimension_numbers<[1], [0], [0], [1], [0, 0, 1, 1], [], []>} : vector<128x256xbf16>, vector<256x128xbf16>, vector<128x128xf32> -> vector<128x128xf32>
    %c0_15 = arith.constant 0 : index
    %c0_16 = arith.constant 0 : index
    %22 = vector.load %arg7[%c0_15, %c0_16] : memref<1x128xf32, #tpu.memory_space<vmem>>, vector<1x128xf32>
    %23 = vector.broadcast %22 : vector<1x128xf32> to vector<128x128xf32>
    %24 = arith.addf %21, %23 : vector<128x128xf32>
    %cst_17 = arith.constant 0.000000e+00 : f32
    %25 = vector.broadcast %cst_17 : f32 to vector<128x128xf32>
    %26 = arith.maximumf %24, %25 : vector<128x128xf32>
    %c0_18 = arith.constant 0 : index
    %c0_19 = arith.constant 0 : index
    %27 = vector.load %arg8[%c0_18, %c0_19] : memref<128x128xf32, #tpu.memory_space<vmem>>, vector<128x128xf32>
    tpu.vector_store %arg8[%c0_18, %c0_19], %26 {strides = array<i32>} : memref<128x128xf32, #tpu.memory_space<vmem>>, vector<128x128xf32>,
    return
  }
  func.func @transform_0(%arg0: i32) -> (i32, i32) {
    %c0_i32 = arith.constant 0 : i32
    %c0_i32_0 = arith.constant 0 : i32
    return %arg0, %c0_i32 : i32, i32
  }
  func.func @transform_1(%arg0: i32) -> (i32, i32) {
    %c0_i32 = arith.constant 0 : i32
    %c0_i32_0 = arith.constant 0 : i32
    %c0_i32_1 = arith.constant 0 : i32
    return %c0_i32, %c0_i32_0 : i32, i32
  }
  func.func @transform_2(%arg0: i32) -> (i32, i32) {
    %c0_i32 = arith.constant 0 : i32
    %c0_i32_0 = arith.constant 0 : i32
    %c0_i32_1 = arith.constant 0 : i32
    return %c0_i32, %c0_i32_0 : i32, i32
  }
  func.func @transform_3(%arg0: i32) -> (i32, i32) {
    %c0_i32 = arith.constant 0 : i32
    %c0_i32_0 = arith.constant 0 : i32
    %c0_i32_1 = arith.constant 0 : i32
    return %c0_i32, %c0_i32_0 : i32, i32
  }
  func.func @transform_4(%arg0: i32) -> (i32, i32) {
    %c0_i32 = arith.constant 0 : i32
    %c0_i32_0 = arith.constant 0 : i32
    %c0_i32_1 = arith.constant 0 : i32
    return %c0_i32, %c0_i32_0 : i32, i32
  }
  func.func @transform_5(%arg0: i32) -> (i32, i32) {
    %c0_i32 = arith.constant 0 : i32
    %c0_i32_0 = arith.constant 0 : i32
    %c0_i32_1 = arith.constant 0 : i32
    return %c0_i32, %c0_i32_0 : i32, i32
  }
  func.func @transform_6(%arg0: i32) -> (i32, i32) {
    %c0_i32 = arith.constant 0 : i32
    %c0_i32_0 = arith.constant 0 : i32
    %c0_i32_1 = arith.constant 0 : i32
    return %c0_i32, %c0_i32_0 : i32, i32
  }
  func.func @transform_7(%arg0: i32) -> (i32, i32) {
    %c0_i32 = arith.constant 0 : i32
    %c0_i32_0 = arith.constant 0 : i32
    return %arg0, %c0_i32 : i32, i32
  }
}

</mosaic_0001>

<llo_original>
// kernel: linear_skip_block.1
$region0: #{linear_skip_block.1}
  #allocation0 [shape = 'u32[]', space=smem, size = 0x4, offset = 0x4, fixed_abs, tag = 'smem constant byte address 0x4 - core index']
  #allocation1 [shape = 'u32[144,128]{1,0:T(1,128)}', space=vmem, size = 0x12000, scoped, tag = 'internal scratch']
  %s0 = inlined_call_operand.vmem [shape: f32[125,256], index: 0, kind: input, shape index: {}]
  %s1 = inlined_call_operand.vmem [shape: bf16[256,256], index: 1, kind: input, shape index: {}]
  %s2 = inlined_call_operand.vmem [shape: f32[1,256], index: 2, kind: input, shape index: {}]
  %s3 = inlined_call_operand.vmem [shape: bf16[256,256], index: 3, kind: input, shape index: {}]
  %s4 = inlined_call_operand.vmem [shape: f32[1,256], index: 4, kind: input, shape index: {}]
  %s5 = inlined_call_operand.vmem [shape: bf16[256,128], index: 5, kind: input, shape index: {}]
  %s6 = inlined_call_operand.vmem [shape: f32[1,128], index: 6, kind: input, shape index: {}]
  %s7 = inlined_call_operand.vmem [shape: f32[125,128], index: 7, kind: output, shape index: {}]
  %s8 = sld [smem:[#allocation0]]
  $region38: #{linear_skip_block.1} parent=0
    _
  %s10 = ssub.s32 1, %s8
  %s11 = scalar_select 0, %s10, %s8
  // Predicated region
  $region2: #{linear_skip_block.1} parent=0 // pred_check
    _
  $region3: #{linear_skip_block.1} parent=0 // pred_check_branch
    %13 = sbr.rel (0) target = $region5
  $region4: #{linear_skip_block.1} parent=0 // pred_region
    _
  $region5: #{linear_skip_block.1} parent=0 // pred_fallthru
    _
  // Predicated region
  $region6: #{linear_skip_block.1} parent=0 // pred_check
    _
  $region7: #{linear_skip_block.1} parent=0 // pred_check_branch
    %15 = sbr.rel (0) target = $region9
  $region8: #{linear_skip_block.1} parent=0 // pred_region
    _
  $region9: #{linear_skip_block.1} parent=0 // pred_fallthru
    _
  // Predicated region
  $region10: #{linear_skip_block.1} parent=0 // pred_check
    _
  $region11: #{linear_skip_block.1} parent=0 // pred_check_branch
    %17 = sbr.rel (0) target = $region13
  $region12: #{linear_skip_block.1} parent=0 // pred_region
    _
  $region13: #{linear_skip_block.1} parent=0 // pred_fallthru
    _
  // Predicated region
  $region14: #{linear_skip_block.1} parent=0 // pred_check
    _
  $region15: #{linear_skip_block.1} parent=0 // pred_check_branch
    %19 = sbr.rel (0) target = $region17
  $region16: #{linear_skip_block.1} parent=0 // pred_region
    _
  $region17: #{linear_skip_block.1} parent=0 // pred_fallthru
    _
  // Predicated region
  $region18: #{linear_skip_block.1} parent=0 // pred_check
    _
  $region19: #{linear_skip_block.1} parent=0 // pred_check_branch
    %21 = sbr.rel (0) target = $region21
  $region20: #{linear_skip_block.1} parent=0 // pred_region
    _
  $region21: #{linear_skip_block.1} parent=0 // pred_fallthru
    _
  // Predicated region
  $region22: #{linear_skip_block.1} parent=0 // pred_check
    _
  $region23: #{linear_skip_block.1} parent=0 // pred_check_branch
    %23 = sbr.rel (0) target = $region25
  $region24: #{linear_skip_block.1} parent=0 // pred_region
    _
  $region25: #{linear_skip_block.1} parent=0 // pred_fallthru
    _
  // Predicated region
  $region26: #{linear_skip_block.1} parent=0 // pred_check
    _
  $region27: #{linear_skip_block.1} parent=0 // pred_check_branch
    %25 = sbr.rel (0) target = $region29
  $region28: #{linear_skip_block.1} parent=0 // pred_region
    _
  $region29: #{linear_skip_block.1} parent=0 // pred_fallthru
    _
  %v27 = vld [vmem:[%s0] sm:$0xff]
  %v28 = vld [vmem:[%s0 + $0x8] sm:$0xff]
  %v29 = vld [vmem:[%s0 + $0x10] sm:$0xff]
  %v30 = vld [vmem:[%s0 + $0x18] sm:$0xff]
  %v31 = vld [vmem:[%s0 + $0x20] sm:$0xff]
  %v32 = vld [vmem:[%s0 + $0x28] sm:$0xff]
  %v33 = vld [vmem:[%s0 + $0x30] sm:$0xff]
  %v34 = vld [vmem:[%s0 + $0x38] sm:$0xff]
  %v35 = vld [vmem:[%s0 + $0x40] sm:$0xff]
  %v36 = vld [vmem:[%s0 + $0x48] sm:$0xff]
  %v37 = vld [vmem:[%s0 + $0x50] sm:$0xff]
  %v38 = vld [vmem:[%s0 + $0x58] sm:$0xff]
  %v39 = vld [vmem:[%s0 + $0x60] sm:$0xff]
  %v40 = vld [vmem:[%s0 + $0x68] sm:$0xff]
  %v41 = vld [vmem:[%s0 + $0x70] sm:$0xff]
  %v42 = vld [vmem:[%s0 + $0x78] sm:$0xff]
  %v43 = vld [vmem:[%s0 + $0x80] sm:$0xff]
  %v44 = vld [vmem:[%s0 + $0x88] sm:$0xff]
  %v45 = vld [vmem:[%s0 + $0x90] sm:$0xff]
  %v46 = vld [vmem:[%s0 + $0x98] sm:$0xff]
  %v47 = vld [vmem:[%s0 + $0xa0] sm:$0xff]
  %v48 = vld [vmem:[%s0 + $0xa8] sm:$0xff]
  %v49 = vld [vmem:[%s0 + $0xb0] sm:$0xff]
  %v50 = vld [vmem:[%s0 + $0xb8] sm:$0xff]
  %v51 = vld [vmem:[%s0 + $0xc0] sm:$0xff]
  %v52 = vld [vmem:[%s0 + $0xc8] sm:$0xff]
  %v53 = vld [vmem:[%s0 + $0xd0] sm:$0xff]
  %v54 = vld [vmem:[%s0 + $0xd8] sm:$0xff]
  %v55 = vld [vmem:[%s0 + $0xe0] sm:$0xff]
  %v56 = vld [vmem:[%s0 + $0xe8] sm:$0xff]
  %v57 = vld [vmem:[%s0 + $0xf0] sm:$0xff]
  %v58 = vld [vmem:[%s0 + $0xf8] sm:$0xff]
  %v59 = vpack.c.bf16 %v29, %v27
  %v60 = vpack.c.bf16 %v30, %v28
  %v61 = vpack.c.bf16 %v33, %v31
  %v62 = vpack.c.bf16 %v34, %v32
  %v63 = vpack.c.bf16 %v37, %v35
  %v64 = vpack.c.bf16 %v38, %v36
  %v65 = vpack.c.bf16 %v41, %v39
  %v66 = vpack.c.bf16 %v42, %v40
  %v67 = vpack.c.bf16 %v45, %v43
  %v68 = vpack.c.bf16 %v46, %v44
  %v69 = vpack.c.bf16 %v49, %v47
  %v70 = vpack.c.bf16 %v50, %v48
  %v71 = vpack.c.bf16 %v53, %v51
  %v72 = vpack.c.bf16 %v54, %v52
  %v73 = vpack.c.bf16 %v57, %v55
  %v74 = vpack.c.bf16 %v58, %v56
  %v75 = vld [vmem:[%s1] sm:$0xff]
  %v76 = vld [vmem:[%s1 + $0x8] sm:$0xff]
  %v77 = vld [vmem:[%s1 + $0x10] sm:$0xff]
  %v78 = vld [vmem:[%s1 + $0x18] sm:$0xff]
  %v79 = vld [vmem:[%s1 + $0x20] sm:$0xff]
  %v80 = vld [vmem:[%s1 + $0x28] sm:$0xff]
  %v81 = vld [vmem:[%s1 + $0x30] sm:$0xff]
  %v82 = vld [vmem:[%s1 + $0x38] sm:$0xff]
  %v83 = vld [vmem:[%s1 + $0x40] sm:$0xff]
  %v84 = vld [vmem:[%s1 + $0x48] sm:$0xff]
  %v85 = vld [vmem:[%s1 + $0x50] sm:$0xff]
  %v86 = vld [vmem:[%s1 + $0x58] sm:$0xff]
  %v87 = vld [vmem:[%s1 + $0x60] sm:$0xff]
  %v88 = vld [vmem:[%s1 + $0x68] sm:$0xff]
  %v89 = vld [vmem:[%s1 + $0x70] sm:$0xff]
  %v90 = vld [vmem:[%s1 + $0x78] sm:$0xff]
  %v91 = vld [vmem:[%s1 + $0x80] sm:$0xff]
  %v92 = vld [vmem:[%s1 + $0x88] sm:$0xff]
  %v93 = vld [vmem:[%s1 + $0x90] sm:$0xff]
  %v94 = vld [vmem:[%s1 + $0x98] sm:$0xff]
  %v95 = vld [vmem:[%s1 + $0xa0] sm:$0xff]
  %v96 = vld [vmem:[%s1 + $0xa8] sm:$0xff]
  %v97 = vld [vmem:[%s1 + $0xb0] sm:$0xff]
  %v98 = vld [vmem:[%s1 + $0xb8] sm:$0xff]
  %v99 = vld [vmem:[%s1 + $0xc0] sm:$0xff]
  %v100 = vld [vmem:[%s1 + $0xc8] sm:$0xff]
  %v101 = vld [vmem:[%s1 + $0xd0] sm:$0xff]
  %v102 = vld [vmem:[%s1 + $0xd8] sm:$0xff]
  %v103 = vld [vmem:[%s1 + $0xe0] sm:$0xff]
  %v104 = vld [vmem:[%s1 + $0xe8] sm:$0xff]
  %v105 = vld [vmem:[%s1 + $0xf0] sm:$0xff]
  %v106 = vld [vmem:[%s1 + $0xf8] sm:$0xff]
  %v107 = vld [vmem:[%s2] sm:$0x3]
  %v109 = vlaneseq
  %v110 = vshrl.u32 %v109, 7
  %v111 = vsub.s32 0, %v110
  %v112 = vrot.slane %v107, %v111
  %v113 = vlaneseq
  %v114 = vshrl.u32 %v113, 7
  %v115 = vsub.s32 1, %v114
  %v116 = vrot.slane %v107, %v115
  %v151 = vunpack.c.l.b16 %v75
  %v152 = vunpack.c.h.b16 %v75
  %v153 = vunpack.c.l.b16 %v76
  %v154 = vunpack.c.h.b16 %v76
  %v155 = vunpack.c.l.b16 %v77
  %v156 = vunpack.c.h.b16 %v77
  %v157 = vunpack.c.l.b16 %v78
  %v158 = vunpack.c.h.b16 %v78
  %v159 = vunpack.c.l.b16 %v79
  %v160 = vunpack.c.h.b16 %v79
  %v161 = vunpack.c.l.b16 %v80
  %v162 = vunpack.c.h.b16 %v80
  %v163 = vunpack.c.l.b16 %v81
  %v164 = vunpack.c.h.b16 %v81
  %v165 = vunpack.c.l.b16 %v82
  %v166 = vunpack.c.h.b16 %v82
  %v167 = vunpack.c.l.b16 %v83
  %v168 = vunpack.c.h.b16 %v83
  %v169 = vunpack.c.l.b16 %v84
  %v170 = vunpack.c.h.b16 %v84
  %v171 = vunpack.c.l.b16 %v85
  %v172 = vunpack.c.h.b16 %v85
  %v173 = vunpack.c.l.b16 %v86
  %v174 = vunpack.c.h.b16 %v86
  %v175 = vunpack.c.l.b16 %v87
  %v176 = vunpack.c.h.b16 %v87
  %v177 = vunpack.c.l.b16 %v88
  %v178 = vunpack.c.h.b16 %v88
  %v179 = vunpack.c.l.b16 %v89
  %v180 = vunpack.c.h.b16 %v89
  %v181 = vunpack.c.l.b16 %v90
  %v182 = vunpack.c.h.b16 %v90
  %v183 = vunpack.c.l.b16 %v91
  %v184 = vunpack.c.h.b16 %v91
  %v185 = vunpack.c.l.b16 %v92
  %v186 = vunpack.c.h.b16 %v92
  %v187 = vunpack.c.l.b16 %v93
  %v188 = vunpack.c.h.b16 %v93
  %v189 = vunpack.c.l.b16 %v94
  %v190 = vunpack.c.h.b16 %v94
  %v191 = vunpack.c.l.b16 %v95
  %v192 = vunpack.c.h.b16 %v95
  %v193 = vunpack.c.l.b16 %v96
  %v194 = vunpack.c.h.b16 %v96
  %v195 = vunpack.c.l.b16 %v97
  %v196 = vunpack.c.h.b16 %v97
  %v197 = vunpack.c.l.b16 %v98
  %v198 = vunpack.c.h.b16 %v98
  %v199 = vunpack.c.l.b16 %v99
  %v200 = vunpack.c.h.b16 %v99
  %v201 = vunpack.c.l.b16 %v100
  %v202 = vunpack.c.h.b16 %v100
  %v203 = vunpack.c.l.b16 %v101
  %v204 = vunpack.c.h.b16 %v101
  %v205 = vunpack.c.l.b16 %v102
  %v206 = vunpack.c.h.b16 %v102
  %v207 = vunpack.c.l.b16 %v103
  %v208 = vunpack.c.h.b16 %v103
  %v209 = vunpack.c.l.b16 %v104
  %v210 = vunpack.c.h.b16 %v104
  %v211 = vunpack.c.l.b16 %v105
  %v212 = vunpack.c.h.b16 %v105
  %v213 = vunpack.c.l.b16 %v106
  %v214 = vunpack.c.h.b16 %v106
  %v215 = vpack.c.b16 %v153, %v151
  %v216 = vpack.c.b16 %v154, %v152
  %v217 = vpack.c.b16 %v157, %v155
  %v218 = vpack.c.b16 %v158, %v156
  %v219 = vpack.c.b16 %v161, %v159
  %v220 = vpack.c.b16 %v162, %v160
  %v221 = vpack.c.b16 %v165, %v163
  %v222 = vpack.c.b16 %v166, %v164
  %v223 = vpack.c.b16 %v169, %v167
  %v224 = vpack.c.b16 %v170, %v168
  %v225 = vpack.c.b16 %v173, %v171
  %v226 = vpack.c.b16 %v174, %v172
  %v227 = vpack.c.b16 %v177, %v175
  %v228 = vpack.c.b16 %v178, %v176
  %v229 = vpack.c.b16 %v181, %v179
  %v230 = vpack.c.b16 %v182, %v180
  %v231 = vpack.c.b16 %v185, %v183
  %v232 = vpack.c.b16 %v186, %v184
  %v233 = vpack.c.b16 %v189, %v187
  %v234 = vpack.c.b16 %v190, %v188
  %v235 = vpack.c.b16 %v193, %v191
  %v236 = vpack.c.b16 %v194, %v192
  %v237 = vpack.c.b16 %v197, %v195
  %v238 = vpack.c.b16 %v198, %v196
  %v239 = vpack.c.b16 %v201, %v199
  %v240 = vpack.c.b16 %v202, %v200
  %v241 = vpack.c.b16 %v205, %v203
  %v242 = vpack.c.b16 %v206, %v204
  %v243 = vpack.c.b16 %v209, %v207
  %v244 = vpack.c.b16 %v210, %v208
  %v245 = vpack.c.b16 %v213, %v211
  %v246 = vpack.c.b16 %v214, %v212
  %279 = vmatprep.subr.bf16.mxu0 %v216
  %280 = vmatpush1.bf16.msra.mxu0 %v215
  %281 = vmatprep.subr.bf16.mxu0 %v218
  %282 = vmatpush1.bf16.msra.mxu0 %v217
  %283 = vmatprep.subr.bf16.mxu0 %v220
  %284 = vmatpush1.bf16.msra.mxu0 %v219
  %285 = vmatprep.subr.bf16.mxu0 %v222
  %286 = vmatpush1.bf16.msra.mxu0 %v221
  %287 = vmatprep.subr.bf16.mxu0 %v224
  %288 = vmatpush1.bf16.msra.mxu0 %v223
  %289 = vmatprep.subr.bf16.mxu0 %v226
  %290 = vmatpush1.bf16.msra.mxu0 %v225
  %291 = vmatprep.subr.bf16.mxu0 %v228
  %292 = vmatpush1.bf16.msra.mxu0 %v227
  %293 = vmatprep.subr.bf16.mxu0 %v230
  %294 = vmatpush1.bf16.msra.mxu0 %v229
  %295 = vmatprep.subr.bf16.mxu0 %v232
  %296 = vmatpush1.bf16.msra.mxu0 %v231
  %297 = vmatprep.subr.bf16.mxu0 %v234
  %298 = vmatpush1.bf16.msra.mxu0 %v233
  %299 = vmatprep.subr.bf16.mxu0 %v236
  %300 = vmatpush1.bf16.msra.mxu0 %v235
  %301 = vmatprep.subr.bf16.mxu0 %v238
  %302 = vmatpush1.bf16.msra.mxu0 %v237
  %303 = vmatprep.subr.bf16.mxu0 %v240
  %304 = vmatpush1.bf16.msra.mxu0 %v239
  %305 = vmatprep.subr.bf16.mxu0 %v242
  %306 = vmatpush1.bf16.msra.mxu0 %v241
  %307 = vmatprep.subr.bf16.mxu0 %v244
  %308 = vmatpush1.bf16.msra.mxu0 %v243
  %309 = vmatprep.subr.bf16.mxu0 %v246
  %310 = vmatpush1.bf16.msra.mxu0 %v245
  %311 = vmatprep.mubr.bf16.mxu0 %v60
  %312 = vmatmul.mubr.bf16.gmra.mrb[0].mxu0 %v59
  %v313 = vpop.f32.mrb[0].mxu0
  %v314 = vadd.f32 %v112, %v313
  %v315 = vpop.f32.mrb[0].mxu0
  %v316 = vadd.f32 %v116, %v315
  %v317 = vpop.f32.mrb[0].mxu0
  %v318 = vadd.f32 %v112, %v317
  %v319 = vpop.f32.mrb[0].mxu0
  %v320 = vadd.f32 %v116, %v319
  %321 = vmatprep.mubr.bf16.mxu0 %v62
  %322 = vmatmul.mubr.bf16.gmra.mrb[0].mxu0 %v61
  %v323 = vpop.f32.mrb[0].mxu0
  %v324 = vadd.f32 %v112, %v323
  %v325 = vpop.f32.mrb[0].mxu0
  %v326 = vadd.f32 %v116, %v325
  %v327 = vpop.f32.mrb[0].mxu0
  %v328 = vadd.f32 %v112, %v327
  %v329 = vpop.f32.mrb[0].mxu0
  %v330 = vadd.f32 %v116, %v329
  %331 = vmatprep.mubr.bf16.mxu0 %v64
  %332 = vmatmul.mubr.bf16.gmra.mrb[0].mxu0 %v63
  %v333 = vpop.f32.mrb[0].mxu0
  %v334 = vadd.f32 %v112, %v333
  %v335 = vpop.f32.mrb[0].mxu0
  %v336 = vadd.f32 %v116, %v335
  %v337 = vpop.f32.mrb[0].mxu0
  %v338 = vadd.f32 %v112, %v337
  %v339 = vpop.f32.mrb[0].mxu0
  %v340 = vadd.f32 %v116, %v339
  %341 = vmatprep.mubr.bf16.mxu0 %v66
  %342 = vmatmul.mubr.bf16.gmra.mrb[0].mxu0 %v65
  %v343 = vpop.f32.mrb[0].mxu0
  %v344 = vadd.f32 %v112, %v343
  %v345 = vpop.f32.mrb[0].mxu0
  %v346 = vadd.f32 %v116, %v345
  %v347 = vpop.f32.mrb[0].mxu0
  %v348 = vadd.f32 %v112, %v347
  %v349 = vpop.f32.mrb[0].mxu0
  %v350 = vadd.f32 %v116, %v349
  %351 = vmatprep.mubr.bf16.mxu0 %v68
  %352 = vmatmul.mubr.bf16.gmra.mrb[0].mxu0 %v67
  %v353 = vpop.f32.mrb[0].mxu0
  %v354 = vadd.f32 %v112, %v353
  %v355 = vpop.f32.mrb[0].mxu0
  %v356 = vadd.f32 %v116, %v355
  %v357 = vpop.f32.mrb[0].mxu0
  %v358 = vadd.f32 %v112, %v357
  %v359 = vpop.f32.mrb[0].mxu0
  %v360 = vadd.f32 %v116, %v359
  %361 = vmatprep.mubr.bf16.mxu0 %v70
  %362 = vmatmul.mubr.bf16.gmra.mrb[0].mxu0 %v69
  %v363 = vpop.f32.mrb[0].mxu0
  %v364 = vadd.f32 %v112, %v363
  %v365 = vpop.f32.mrb[0].mxu0
  %v366 = vadd.f32 %v116, %v365
  %v367 = vpop.f32.mrb[0].mxu0
  %v368 = vadd.f32 %v112, %v367
  %v369 = vpop.f32.mrb[0].mxu0
  %v370 = vadd.f32 %v116, %v369
  %371 = vmatprep.mubr.bf16.mxu0 %v72
  %372 = vmatmul.mubr.bf16.gmra.mrb[0].mxu0 %v71
  %v373 = vpop.f32.mrb[0].mxu0
  %v374 = vadd.f32 %v112, %v373
  %v375 = vpop.f32.mrb[0].mxu0
  %v376 = vadd.f32 %v116, %v375
  %v377 = vpop.f32.mrb[0].mxu0
  %v378 = vadd.f32 %v112, %v377
  %v379 = vpop.f32.mrb[0].mxu0
  %v380 = vadd.f32 %v116, %v379
  %381 = vmatprep.mubr.bf16.mxu0 %v74
  %382 = vmatmul.mubr.bf16.gmra.mrb[0].mxu0 %v73
  %v383 = vpop.f32.mrb[0].mxu0
  %v384 = vadd.f32 %v112, %v383
  %v385 = vpop.f32.mrb[0].mxu0
  %v386 = vadd.f32 %v116, %v385
  %v387 = vpop.f32.mrb[0].mxu0
  %v388 = vadd.f32 %v112, %v387
  %v389 = vpop.f32.mrb[0].mxu0
  %v390 = vadd.f32 %v116, %v389
  %391 = vdwg.mxu0
  %v392 = vmax.f32 %v314, 0.0
  %v393 = vmax.f32 %v316, 0.0
  %v394 = vmax.f32 %v318, 0.0
  %v395 = vmax.f32 %v320, 0.0
  %v396 = vmax.f32 %v324, 0.0
  %v397 = vmax.f32 %v326, 0.0
  %v398 = vmax.f32 %v328, 0.0
  %v399 = vmax.f32 %v330, 0.0
  %v400 = vmax.f32 %v334, 0.0
  %v401 = vmax.f32 %v336, 0.0
  %v402 = vmax.f32 %v338, 0.0
  %v403 = vmax.f32 %v340, 0.0
  %v404 = vmax.f32 %v344, 0.0
  %v405 = vmax.f32 %v346, 0.0
  %v406 = vmax.f32 %v348, 0.0
  %v407 = vmax.f32 %v350, 0.0
  %v408 = vmax.f32 %v354, 0.0
  %v409 = vmax.f32 %v356, 0.0
  %v410 = vmax.f32 %v358, 0.0
  %v411 = vmax.f32 %v360, 0.0
  %v412 = vmax.f32 %v364, 0.0
  %v413 = vmax.f32 %v366, 0.0
  %v414 = vmax.f32 %v368, 0.0
  %v415 = vmax.f32 %v370, 0.0
  %v416 = vmax.f32 %v374, 0.0
  %v417 = vmax.f32 %v376, 0.0
  %v418 = vmax.f32 %v378, 0.0
  %v419 = vmax.f32 %v380, 0.0
  %v420 = vmax.f32 %v384, 0.0
  %v421 = vmax.f32 %v386, 0.0
  %v422 = vmax.f32 %v388, 0.0
  %v423 = vmax.f32 %v390, 0.0
  %v424 = vadd.f32 %v392, %v27
  %v425 = vadd.f32 %v393, %v28
  %v426 = vadd.f32 %v394, %v29
  %v427 = vadd.f32 %v395, %v30
  %v428 = vadd.f32 %v396, %v31
  %v429 = vadd.f32 %v397, %v32
  %v430 = vadd.f32 %v398, %v33
  %v431 = vadd.f32 %v399, %v34
  %v432 = vadd.f32 %v400, %v35
  %v433 = vadd.f32 %v401, %v36
  %v434 = vadd.f32 %v402, %v37
  %v435 = vadd.f32 %v403, %v38
  %v436 = vadd.f32 %v404, %v39
  %v437 = vadd.f32 %v405, %v40
  %v438 = vadd.f32 %v406, %v41
  %v439 = vadd.f32 %v407, %v42
  %v440 = vadd.f32 %v408, %v43
  %v441 = vadd.f32 %v409, %v44
  %v442 = vadd.f32 %v410, %v45
  %v443 = vadd.f32 %v411, %v46
  %v444 = vadd.f32 %v412, %v47
  %v445 = vadd.f32 %v413, %v48
  %v446 = vadd.f32 %v414, %v49
  %v447 = vadd.f32 %v415, %v50
  %v448 = vadd.f32 %v416, %v51
  %v449 = vadd.f32 %v417, %v52
  %v450 = vadd.f32 %v418, %v53
  %v451 = vadd.f32 %v419, %v54
  %v452 = vadd.f32 %v420, %v55
  %v453 = vadd.f32 %v421, %v56
  %v454 = vadd.f32 %v422, %v57
  %v455 = vadd.f32 %v423, %v58
  %v456 = vpack.c.bf16 %v426, %v424
  %v457 = vpack.c.bf16 %v427, %v425
  %v458 = vpack.c.bf16 %v430, %v428
  %v459 = vpack.c.bf16 %v431, %v429
  %v460 = vpack.c.bf16 %v434, %v432
  %v461 = vpack.c.bf16 %v435, %v433
  %v462 = vpack.c.bf16 %v438, %v436
  %v463 = vpack.c.bf16 %v439, %v437
  %v464 = vpack.c.bf16 %v442, %v440
  %v465 = vpack.c.bf16 %v443, %v441
  %v466 = vpack.c.bf16 %v446, %v444
  %v467 = vpack.c.bf16 %v447, %v445
  %v468 = vpack.c.bf16 %v450, %v448
  %v469 = vpack.c.bf16 %v451, %v449
  %v470 = vpack.c.bf16 %v454, %v452
  %v471 = vpack.c.bf16 %v455, %v453
  %v472 = vld [vmem:[%s3] sm:$0xff]
  %v473 = vld [vmem:[%s3 + $0x8] sm:$0xff]
  %v474 = vld [vmem:[%s3 + $0x10] sm:$0xff]
  %v475 = vld [vmem:[%s3 + $0x18] sm:$0xff]
  %v476 = vld [vmem:[%s3 + $0x20] sm:$0xff]
  %v477 = vld [vmem:[%s3 + $0x28] sm:$0xff]
  %v478 = vld [vmem:[%s3 + $0x30] sm:$0xff]
  %v479 = vld [vmem:[%s3 + $0x38] sm:$0xff]
  %v480 = vld [vmem:[%s3 + $0x40] sm:$0xff]
  %v481 = vld [vmem:[%s3 + $0x48] sm:$0xff]
  %v482 = vld [vmem:[%s3 + $0x50] sm:$0xff]
  %v483 = vld [vmem:[%s3 + $0x58] sm:$0xff]
  %v484 = vld [vmem:[%s3 + $0x60] sm:$0xff]
  %v485 = vld [vmem:[%s3 + $0x68] sm:$0xff]
  %v486 = vld [vmem:[%s3 + $0x70] sm:$0xff]
  %v487 = vld [vmem:[%s3 + $0x78] sm:$0xff]
  %v488 = vld [vmem:[%s3 + $0x80] sm:$0xff]
  %v489 = vld [vmem:[%s3 + $0x88] sm:$0xff]
  %v490 = vld [vmem:[%s3 + $0x90] sm:$0xff]
  %v491 = vld [vmem:[%s3 + $0x98] sm:$0xff]
  %v492 = vld [vmem:[%s3 + $0xa0] sm:$0xff]
  %v493 = vld [vmem:[%s3 + $0xa8] sm:$0xff]
  %v494 = vld [vmem:[%s3 + $0xb0] sm:$0xff]
  %v495 = vld [vmem:[%s3 + $0xb8] sm:$0xff]
  %v496 = vld [vmem:[%s3 + $0xc0] sm:$0xff]
  %v497 = vld [vmem:[%s3 + $0xc8] sm:$0xff]
  %v498 = vld [vmem:[%s3 + $0xd0] sm:$0xff]
  %v499 = vld [vmem:[%s3 + $0xd8] sm:$0xff]
  %v500 = vld [vmem:[%s3 + $0xe0] sm:$0xff]
  %v501 = vld [vmem:[%s3 + $0xe8] sm:$0xff]
  %v502 = vld [vmem:[%s3 + $0xf0] sm:$0xff]
  %v503 = vld [vmem:[%s3 + $0xf8] sm:$0xff]
  %v504 = vld [vmem:[%s4] sm:$0x3]
  %v506 = vlaneseq
  %v507 = vshrl.u32 %v506, 7
  %v508 = vsub.s32 0, %v507
  %v509 = vrot.slane %v504, %v508
  %v510 = vlaneseq
  %v511 = vshrl.u32 %v510, 7
  %v512 = vsub.s32 1, %v511
  %v513 = vrot.slane %v504, %v512
  %v548 = vunpack.c.l.b16 %v472
  %v549 = vunpack.c.h.b16 %v472
  %v550 = vunpack.c.l.b16 %v473
  %v551 = vunpack.c.h.b16 %v473
  %v552 = vunpack.c.l.b16 %v474
  %v553 = vunpack.c.h.b16 %v474
  %v554 = vunpack.c.l.b16 %v475
  %v555 = vunpack.c.h.b16 %v475
  %v556 = vunpack.c.l.b16 %v476
  %v557 = vunpack.c.h.b16 %v476
  %v558 = vunpack.c.l.b16 %v477
  %v559 = vunpack.c.h.b16 %v477
  %v560 = vunpack.c.l.b16 %v478
  %v561 = vunpack.c.h.b16 %v478
  %v562 = vunpack.c.l.b16 %v479
  %v563 = vunpack.c.h.b16 %v479
  %v564 = vunpack.c.l.b16 %v480
  %v565 = vunpack.c.h.b16 %v480
  %v566 = vunpack.c.l.b16 %v481
  %v567 = vunpack.c.h.b16 %v481
  %v568 = vunpack.c.l.b16 %v482
  %v569 = vunpack.c.h.b16 %v482
  %v570 = vunpack.c.l.b16 %v483
  %v571 = vunpack.c.h.b16 %v483
  %v572 = vunpack.c.l.b16 %v484
  %v573 = vunpack.c.h.b16 %v484
  %v574 = vunpack.c.l.b16 %v485
  %v575 = vunpack.c.h.b16 %v485
  %v576 = vunpack.c.l.b16 %v486
  %v577 = vunpack.c.h.b16 %v486
  %v578 = vunpack.c.l.b16 %v487
  %v579 = vunpack.c.h.b16 %v487
  %v580 = vunpack.c.l.b16 %v488
  %v581 = vunpack.c.h.b16 %v488
  %v582 = vunpack.c.l.b16 %v489
  %v583 = vunpack.c.h.b16 %v489
  %v584 = vunpack.c.l.b16 %v490
  %v585 = vunpack.c.h.b16 %v490
  %v586 = vunpack.c.l.b16 %v491
  %v587 = vunpack.c.h.b16 %v491
  %v588 = vunpack.c.l.b16 %v492
  %v589 = vunpack.c.h.b16 %v492
  %v590 = vunpack.c.l.b16 %v493
  %v591 = vunpack.c.h.b16 %v493
  %v592 = vunpack.c.l.b16 %v494
  %v593 = vunpack.c.h.b16 %v494
  %v594 = vunpack.c.l.b16 %v495
  %v595 = vunpack.c.h.b16 %v495
  %v596 = vunpack.c.l.b16 %v496
  %v597 = vunpack.c.h.b16 %v496
  %v598 = vunpack.c.l.b16 %v497
  %v599 = vunpack.c.h.b16 %v497
  %v600 = vunpack.c.l.b16 %v498
  %v601 = vunpack.c.h.b16 %v498
  %v602 = vunpack.c.l.b16 %v499
  %v603 = vunpack.c.h.b16 %v499
  %v604 = vunpack.c.l.b16 %v500
  %v605 = vunpack.c.h.b16 %v500
  %v606 = vunpack.c.l.b16 %v501
  %v607 = vunpack.c.h.b16 %v501
  %v608 = vunpack.c.l.b16 %v502
  %v609 = vunpack.c.h.b16 %v502
  %v610 = vunpack.c.l.b16 %v503
  %v611 = vunpack.c.h.b16 %v503
  %v612 = vpack.c.b16 %v550, %v548
  %v613 = vpack.c.b16 %v551, %v549
  %v614 = vpack.c.b16 %v554, %v552
  %v615 = vpack.c.b16 %v555, %v553
  %v616 = vpack.c.b16 %v558, %v556
  %v617 = vpack.c.b16 %v559, %v557
  %v618 = vpack.c.b16 %v562, %v560
  %v619 = vpack.c.b16 %v563, %v561
  %v620 = vpack.c.b16 %v566, %v564
  %v621 = vpack.c.b16 %v567, %v565
  %v622 = vpack.c.b16 %v570, %v568
  %v623 = vpack.c.b16 %v571, %v569
  %v624 = vpack.c.b16 %v574, %v572
  %v625 = vpack.c.b16 %v575, %v573
  %v626 = vpack.c.b16 %v578, %v576
  %v627 = vpack.c.b16 %v579, %v577
  %v628 = vpack.c.b16 %v582, %v580
  %v629 = vpack.c.b16 %v583, %v581
  %v630 = vpack.c.b16 %v586, %v584
  %v631 = vpack.c.b16 %v587, %v585
  %v632 = vpack.c.b16 %v590, %v588
  %v633 = vpack.c.b16 %v591, %v589
  %v634 = vpack.c.b16 %v594, %v592
  %v635 = vpack.c.b16 %v595, %v593
  %v636 = vpack.c.b16 %v598, %v596
  %v637 = vpack.c.b16 %v599, %v597
  %v638 = vpack.c.b16 %v602, %v600
  %v639 = vpack.c.b16 %v603, %v601
  %v640 = vpack.c.b16 %v606, %v604
  %v641 = vpack.c.b16 %v607, %v605
  %v642 = vpack.c.b16 %v610, %v608
  %v643 = vpack.c.b16 %v611, %v609
  %676 = vmatprep.subr.bf16.mxu0 %v613
  %677 = vmatpush1.bf16.msra.mxu0 %v612
  %678 = vmatprep.subr.bf16.mxu0 %v615
  %679 = vmatpush1.bf16.msra.mxu0 %v614
  %680 = vmatprep.subr.bf16.mxu0 %v617
  %681 = vmatpush1.bf16.msra.mxu0 %v616
  %682 = vmatprep.subr.bf16.mxu0 %v619
  %683 = vmatpush1.bf16.msra.mxu0 %v618
  %684 = vmatprep.subr.bf16.mxu0 %v621
  %685 = vmatpush1.bf16.msra.mxu0 %v620
  %686 = vmatprep.subr.bf16.mxu0 %v623
  %687 = vmatpush1.bf16.msra.mxu0 %v622
  %688 = vmatprep.subr.bf16.mxu0 %v625
  %689 = vmatpush1.bf16.msra.mxu0 %v624
  %690 = vmatprep.subr.bf16.mxu0 %v627
  %691 = vmatpush1.bf16.msra.mxu0 %v626
  %692 = vmatprep.subr.bf16.mxu0 %v629
  %693 = vmatpush1.bf16.msra.mxu0 %v628
  %694 = vmatprep.subr.bf16.mxu0 %v631
  %695 = vmatpush1.bf16.msra.mxu0 %v630
  %696 = vmatprep.subr.bf16.mxu0 %v633
  %697 = vmatpush1.bf16.msra.mxu0 %v632
  %698 = vmatprep.subr.bf16.mxu0 %v635
  %699 = vmatpush1.bf16.msra.mxu0 %v634
  %700 = vmatprep.subr.bf16.mxu0 %v637
  %701 = vmatpush1.bf16.msra.mxu0 %v636
  %702 = vmatprep.subr.bf16.mxu0 %v639
  %703 = vmatpush1.bf16.msra.mxu0 %v638
  %704 = vmatprep.subr.bf16.mxu0 %v641
  %705 = vmatpush1.bf16.msra.mxu0 %v640
  %706 = vmatprep.subr.bf16.mxu0 %v643
  %707 = vmatpush1.bf16.msra.mxu0 %v642
  %708 = vmatprep.mubr.bf16.mxu0 %v457
  %709 = vmatmul.mubr.bf16.gmra.mrb[0].mxu0 %v456
  %v710 = vpop.f32.mrb[0].mxu0
  %v711 = vadd.f32 %v509, %v710
  %v712 = vpop.f32.mrb[0].mxu0
  %v713 = vadd.f32 %v513, %v712
  %v714 = vpop.f32.mrb[0].mxu0
  %v715 = vadd.f32 %v509, %v714
  %v716 = vpop.f32.mrb[0].mxu0
  %v717 = vadd.f32 %v513, %v716
  %718 = vmatprep.mubr.bf16.mxu0 %v459
  %719 = vmatmul.mubr.bf16.gmra.mrb[0].mxu0 %v458
  %v720 = vpop.f32.mrb[0].mxu0
  %v721 = vadd.f32 %v509, %v720
  %v722 = vpop.f32.mrb[0].mxu0
  %v723 = vadd.f32 %v513, %v722
  %v724 = vpop.f32.mrb[0].mxu0
  %v725 = vadd.f32 %v509, %v724
  %v726 = vpop.f32.mrb[0].mxu0
  %v727 = vadd.f32 %v513, %v726
  %728 = vmatprep.mubr.bf16.mxu0 %v461
  %729 = vmatmul.mubr.bf16.gmra.mrb[0].mxu0 %v460
  %v730 = vpop.f32.mrb[0].mxu0
  %v731 = vadd.f32 %v509, %v730
  %v732 = vpop.f32.mrb[0].mxu0
  %v733 = vadd.f32 %v513, %v732
  %v734 = vpop.f32.mrb[0].mxu0
  %v735 = vadd.f32 %v509, %v734
  %v736 = vpop.f32.mrb[0].mxu0
  %v737 = vadd.f32 %v513, %v736
  %738 = vmatprep.mubr.bf16.mxu0 %v463
  %739 = vmatmul.mubr.bf16.gmra.mrb[0].mxu0 %v462
  %v740 = vpop.f32.mrb[0].mxu0
  %v741 = vadd.f32 %v509, %v740
  %v742 = vpop.f32.mrb[0].mxu0
  %v743 = vadd.f32 %v513, %v742
  %v744 = vpop.f32.mrb[0].mxu0
  %v745 = vadd.f32 %v509, %v744
  %v746 = vpop.f32.mrb[0].mxu0
  %v747 = vadd.f32 %v513, %v746
  %748 = vmatprep.mubr.bf16.mxu0 %v465
  %749 = vmatmul.mubr.bf16.gmra.mrb[0].mxu0 %v464
  %v750 = vpop.f32.mrb[0].mxu0
  %v751 = vadd.f32 %v509, %v750
  %v752 = vpop.f32.mrb[0].mxu0
  %v753 = vadd.f32 %v513, %v752
  %v754 = vpop.f32.mrb[0].mxu0
  %v755 = vadd.f32 %v509, %v754
  %v756 = vpop.f32.mrb[0].mxu0
  %v757 = vadd.f32 %v513, %v756
  %758 = vmatprep.mubr.bf16.mxu0 %v467
  %759 = vmatmul.mubr.bf16.gmra.mrb[0].mxu0 %v466
  %v760 = vpop.f32.mrb[0].mxu0
  %v761 = vadd.f32 %v509, %v760
  %v762 = vpop.f32.mrb[0].mxu0
  %v763 = vadd.f32 %v513, %v762
  %v764 = vpop.f32.mrb[0].mxu0
  %v765 = vadd.f32 %v509, %v764
  %v766 = vpop.f32.mrb[0].mxu0
  %v767 = vadd.f32 %v513, %v766
  %768 = vmatprep.mubr.bf16.mxu0 %v469
  %769 = vmatmul.mubr.bf16.gmra.mrb[0].mxu0 %v468
  %v770 = vpop.f32.mrb[0].mxu0
  %v771 = vadd.f32 %v509, %v770
  %v772 = vpop.f32.mrb[0].mxu0
  %v773 = vadd.f32 %v513, %v772
  %v774 = vpop.f32.mrb[0].mxu0
  %v775 = vadd.f32 %v509, %v774
  %v776 = vpop.f32.mrb[0].mxu0
  %v777 = vadd.f32 %v513, %v776
  %778 = vmatprep.mubr.bf16.mxu0 %v471
  %779 = vmatmul.mubr.bf16.gmra.mrb[0].mxu0 %v470
  %v780 = vpop.f32.mrb[0].mxu0
  %v781 = vadd.f32 %v509, %v780
  %v782 = vpop.f32.mrb[0].mxu0
  %v783 = vadd.f32 %v513, %v782
  %v784 = vpop.f32.mrb[0].mxu0
  %v785 = vadd.f32 %v509, %v784
  %v786 = vpop.f32.mrb[0].mxu0
  %v787 = vadd.f32 %v513, %v786
  %788 = vdwg.mxu0
  %v789 = vmax.f32 %v711, 0.0
  %v790 = vmax.f32 %v713, 0.0
  %v791 = vmax.f32 %v715, 0.0
  %v792 = vmax.f32 %v717, 0.0
  %v793 = vmax.f32 %v721, 0.0
  %v794 = vmax.f32 %v723, 0.0
  %v795 = vmax.f32 %v725, 0.0
  %v796 = vmax.f32 %v727, 0.0
  %v797 = vmax.f32 %v731, 0.0
  %v798 = vmax.f32 %v733, 0.0
  %v799 = vmax.f32 %v735, 0.0
  %v800 = vmax.f32 %v737, 0.0
  %v801 = vmax.f32 %v741, 0.0
  %v802 = vmax.f32 %v743, 0.0
  %v803 = vmax.f32 %v745, 0.0
  %v804 = vmax.f32 %v747, 0.0
  %v805 = vmax.f32 %v751, 0.0
  %v806 = vmax.f32 %v753, 0.0
  %v807 = vmax.f32 %v755, 0.0
  %v808 = vmax.f32 %v757, 0.0
  %v809 = vmax.f32 %v761, 0.0
  %v810 = vmax.f32 %v763, 0.0
  %v811 = vmax.f32 %v765, 0.0
  %v812 = vmax.f32 %v767, 0.0
  %v813 = vmax.f32 %v771, 0.0
  %v814 = vmax.f32 %v773, 0.0
  %v815 = vmax.f32 %v775, 0.0
  %v816 = vmax.f32 %v777, 0.0
  %v817 = vmax.f32 %v781, 0.0
  %v818 = vmax.f32 %v783, 0.0
  %v819 = vmax.f32 %v785, 0.0
  %v820 = vmax.f32 %v787, 0.0
  %v821 = vadd.f32 %v789, %v424
  %v822 = vadd.f32 %v790, %v425
  %v823 = vadd.f32 %v791, %v426
  %v824 = vadd.f32 %v792, %v427
  %v825 = vadd.f32 %v793, %v428
  %v826 = vadd.f32 %v794, %v429
  %v827 = vadd.f32 %v795, %v430
  %v828 = vadd.f32 %v796, %v431
  %v829 = vadd.f32 %v797, %v432
  %v830 = vadd.f32 %v798, %v433
  %v831 = vadd.f32 %v799, %v434
  %v832 = vadd.f32 %v800, %v435
  %v833 = vadd.f32 %v801, %v436
  %v834 = vadd.f32 %v802, %v437
  %v835 = vadd.f32 %v803, %v438
  %v836 = vadd.f32 %v804, %v439
  %v837 = vadd.f32 %v805, %v440
  %v838 = vadd.f32 %v806, %v441
  %v839 = vadd.f32 %v807, %v442
  %v840 = vadd.f32 %v808, %v443
  %v841 = vadd.f32 %v809, %v444
  %v842 = vadd.f32 %v810, %v445
  %v843 = vadd.f32 %v811, %v446
  %v844 = vadd.f32 %v812, %v447
  %v845 = vadd.f32 %v813, %v448
  %v846 = vadd.f32 %v814, %v449
  %v847 = vadd.f32 %v815, %v450
  %v848 = vadd.f32 %v816, %v451
  %v849 = vadd.f32 %v817, %v452
  %v850 = vadd.f32 %v818, %v453
  %v851 = vadd.f32 %v819, %v454
  %v852 = vadd.f32 %v820, %v455
  %v853 = vpack.c.bf16 %v823, %v821
  %v854 = vpack.c.bf16 %v824, %v822
  %v855 = vpack.c.bf16 %v827, %v825
  %v856 = vpack.c.bf16 %v828, %v826
  %v857 = vpack.c.bf16 %v831, %v829
  %v858 = vpack.c.bf16 %v832, %v830
  %v859 = vpack.c.bf16 %v835, %v833
  %v860 = vpack.c.bf16 %v836, %v834
  %v861 = vpack.c.bf16 %v839, %v837
  %v862 = vpack.c.bf16 %v840, %v838
  %v863 = vpack.c.bf16 %v843, %v841
  %v864 = vpack.c.bf16 %v844, %v842
  %v865 = vpack.c.bf16 %v847, %v845
  %v866 = vpack.c.bf16 %v848, %v846
  %v867 = vpack.c.bf16 %v851, %v849
  %v868 = vpack.c.bf16 %v852, %v850
  %v869 = vld [vmem:[%s5] sm:$0xf]
  %v870 = vld [vmem:[%s5 + $0x4] sm:$0xf]
  %v871 = vld [vmem:[%s5 + $0x8] sm:$0xf]
  %v872 = vld [vmem:[%s5 + $0xc] sm:$0xf]
  %v873 = vld [vmem:[%s5 + $0x10] sm:$0xf]
  %v874 = vld [vmem:[%s5 + $0x14] sm:$0xf]
  %v875 = vld [vmem:[%s5 + $0x18] sm:$0xf]
  %v876 = vld [vmem:[%s5 + $0x1c] sm:$0xf]
  %v877 = vld [vmem:[%s5 + $0x20] sm:$0xf]
  %v878 = vld [vmem:[%s5 + $0x24] sm:$0xf]
  %v879 = vld [vmem:[%s5 + $0x28] sm:$0xf]
  %v880 = vld [vmem:[%s5 + $0x2c] sm:$0xf]
  %v881 = vld [vmem:[%s5 + $0x30] sm:$0xf]
  %v882 = vld [vmem:[%s5 + $0x34] sm:$0xf]
  %v883 = vld [vmem:[%s5 + $0x38] sm:$0xf]
  %v884 = vld [vmem:[%s5 + $0x3c] sm:$0xf]
  %v885 = vld [vmem:[%s5 + $0x40] sm:$0xf]
  %v886 = vld [vmem:[%s5 + $0x44] sm:$0xf]
  %v887 = vld [vmem:[%s5 + $0x48] sm:$0xf]
  %v888 = vld [vmem:[%s5 + $0x4c] sm:$0xf]
  %v889 = vld [vmem:[%s5 + $0x50] sm:$0xf]
  %v890 = vld [vmem:[%s5 + $0x54] sm:$0xf]
  %v891 = vld [vmem:[%s5 + $0x58] sm:$0xf]
  %v892 = vld [vmem:[%s5 + $0x5c] sm:$0xf]
  %v893 = vld [vmem:[%s5 + $0x60] sm:$0xf]
  %v894 = vld [vmem:[%s5 + $0x64] sm:$0xf]
  %v895 = vld [vmem:[%s5 + $0x68] sm:$0xf]
  %v896 = vld [vmem:[%s5 + $0x6c] sm:$0xf]
  %v897 = vld [vmem:[%s5 + $0x70] sm:$0xf]
  %v898 = vld [vmem:[%s5 + $0x74] sm:$0xf]
  %v899 = vld [vmem:[%s5 + $0x78] sm:$0xf]
  %v900 = vld [vmem:[%s5 + $0x7c] sm:$0xf]
  %v901 = vld [vmem:[%s6] sm:$0x1]
  %v903 = vlaneseq
  %v904 = vshrl.u32 %v903, 7
  %v905 = vsub.s32 0, %v904
  %v906 = vrot.slane %v901, %v905
  %v940 = vunpack.c.l.b16 %v869
  %v941 = vunpack.c.l.b16 %v870
  %v942 = vunpack.c.l.b16 %v871
  %v943 = vunpack.c.l.b16 %v872
  %v944 = vunpack.c.l.b16 %v873
  %v945 = vunpack.c.l.b16 %v874
  %v946 = vunpack.c.l.b16 %v875
  %v947 = vunpack.c.l.b16 %v876
  %v948 = vunpack.c.l.b16 %v877
  %v949 = vunpack.c.l.b16 %v878
  %v950 = vunpack.c.l.b16 %v879
  %v951 = vunpack.c.l.b16 %v880
  %v952 = vunpack.c.l.b16 %v881
  %v953 = vunpack.c.l.b16 %v882
  %v954 = vunpack.c.l.b16 %v883
  %v955 = vunpack.c.l.b16 %v884
  %v956 = vunpack.c.l.b16 %v885
  %v957 = vunpack.c.l.b16 %v886
  %v958 = vunpack.c.l.b16 %v887
  %v959 = vunpack.c.l.b16 %v888
  %v960 = vunpack.c.l.b16 %v889
  %v961 = vunpack.c.l.b16 %v890
  %v962 = vunpack.c.l.b16 %v891
  %v963 = vunpack.c.l.b16 %v892
  %v964 = vunpack.c.l.b16 %v893
  %v965 = vunpack.c.l.b16 %v894
  %v966 = vunpack.c.l.b16 %v895
  %v967 = vunpack.c.l.b16 %v896
  %v968 = vunpack.c.l.b16 %v897
  %v969 = vunpack.c.l.b16 %v898
  %v970 = vunpack.c.l.b16 %v899
  %v971 = vunpack.c.l.b16 %v900
  %v972 = vpack.c.b16 %v941, %v940
  %v973 = vpack.c.b16 %v943, %v942
  %v974 = vpack.c.b16 %v945, %v944
  %v975 = vpack.c.b16 %v947, %v946
  %v976 = vpack.c.b16 %v949, %v948
  %v977 = vpack.c.b16 %v951, %v950
  %v978 = vpack.c.b16 %v953, %v952
  %v979 = vpack.c.b16 %v955, %v954
  %v980 = vpack.c.b16 %v957, %v956
  %v981 = vpack.c.b16 %v959, %v958
  %v982 = vpack.c.b16 %v961, %v960
  %v983 = vpack.c.b16 %v963, %v962
  %v984 = vpack.c.b16 %v965, %v964
  %v985 = vpack.c.b16 %v967, %v966
  %v986 = vpack.c.b16 %v969, %v968
  %v987 = vpack.c.b16 %v971, %v970
  %1004 = vmatprep.subr.bf16.mxu0 0
  %1005 = vmatpush1.bf16.msra.mxu0 %v972
  %1006 = vmatprep.subr.bf16.mxu0 0
  %1007 = vmatpush1.bf16.msra.mxu0 %v973
  %1008 = vmatprep.subr.bf16.mxu0 0
  %1009 = vmatpush1.bf16.msra.mxu0 %v974
  %1010 = vmatprep.subr.bf16.mxu0 0
  %1011 = vmatpush1.bf16.msra.mxu0 %v975
  %1012 = vmatprep.subr.bf16.mxu0 0
  %1013 = vmatpush1.bf16.msra.mxu0 %v976
  %1014 = vmatprep.subr.bf16.mxu0 0
  %1015 = vmatpush1.bf16.msra.mxu0 %v977
  %1016 = vmatprep.subr.bf16.mxu0 0
  %1017 = vmatpush1.bf16.msra.mxu0 %v978
  %1018 = vmatprep.subr.bf16.mxu0 0
  %1019 = vmatpush1.bf16.msra.mxu0 %v979
  %1020 = vmatprep.subr.bf16.mxu0 0
  %1021 = vmatpush1.bf16.msra.mxu0 %v980
  %1022 = vmatprep.subr.bf16.mxu0 0
  %1023 = vmatpush1.bf16.msra.mxu0 %v981
  %1024 = vmatprep.subr.bf16.mxu0 0
  %1025 = vmatpush1.bf16.msra.mxu0 %v982
  %1026 = vmatprep.subr.bf16.mxu0 0
  %1027 = vmatpush1.bf16.msra.mxu0 %v983
  %1028 = vmatprep.subr.bf16.mxu0 0
  %1029 = vmatpush1.bf16.msra.mxu0 %v984
  %1030 = vmatprep.subr.bf16.mxu0 0
  %1031 = vmatpush1.bf16.msra.mxu0 %v985
  %1032 = vmatprep.subr.bf16.mxu0 0
  %1033 = vmatpush1.bf16.msra.mxu0 %v986
  %1034 = vmatprep.subr.bf16.mxu0 0
  %1035 = vmatpush1.bf16.msra.mxu0 %v987
  %1036 = vmatprep.mubr.bf16.mxu0 %v854
  %1037 = vmatmul.mubr.bf16.gmra.mrb[0].mxu0 %v853
  %v1038 = vpop.f32.mrb[0].mxu0
  %v1039 = vadd.f32 %v906, %v1038
  %v1040 = vpop.f32.mrb[0].mxu0
  %v1041 = vpop.f32.mrb[0].mxu0
  %v1042 = vadd.f32 %v906, %v1041
  %v1043 = vpop.f32.mrb[0].mxu0
  %1044 = vmatprep.mubr.bf16.mxu0 %v856
  %1045 = vmatmul.mubr.bf16.gmra.mrb[0].mxu0 %v855
  %v1046 = vpop.f32.mrb[0].mxu0
  %v1047 = vadd.f32 %v906, %v1046
  %v1048 = vpop.f32.mrb[0].mxu0
  %v1049 = vpop.f32.mrb[0].mxu0
  %v1050 = vadd.f32 %v906, %v1049
  %v1051 = vpop.f32.mrb[0].mxu0
  %1052 = vmatprep.mubr.bf16.mxu0 %v858
  %1053 = vmatmul.mubr.bf16.gmra.mrb[0].mxu0 %v857
  %v1054 = vpop.f32.mrb[0].mxu0
  %v1055 = vadd.f32 %v906, %v1054
  %v1056 = vpop.f32.mrb[0].mxu0
  %v1057 = vpop.f32.mrb[0].mxu0
  %v1058 = vadd.f32 %v906, %v1057
  %v1059 = vpop.f32.mrb[0].mxu0
  %1060 = vmatprep.mubr.bf16.mxu0 %v860
  %1061 = vmatmul.mubr.bf16.gmra.mrb[0].mxu0 %v859
  %v1062 = vpop.f32.mrb[0].mxu0
  %v1063 = vadd.f32 %v906, %v1062
  %v1064 = vpop.f32.mrb[0].mxu0
  %v1065 = vpop.f32.mrb[0].mxu0
  %v1066 = vadd.f32 %v906, %v1065
  %v1067 = vpop.f32.mrb[0].mxu0
  %1068 = vmatprep.mubr.bf16.mxu0 %v862
  %1069 = vmatmul.mubr.bf16.gmra.mrb[0].mxu0 %v861
  %v1070 = vpop.f32.mrb[0].mxu0
  %v1071 = vadd.f32 %v906, %v1070
  %v1072 = vpop.f32.mrb[0].mxu0
  %v1073 = vpop.f32.mrb[0].mxu0
  %v1074 = vadd.f32 %v906, %v1073
  %v1075 = vpop.f32.mrb[0].mxu0
  %1076 = vmatprep.mubr.bf16.mxu0 %v864
  %1077 = vmatmul.mubr.bf16.gmra.mrb[0].mxu0 %v863
  %v1078 = vpop.f32.mrb[0].mxu0
  %v1079 = vadd.f32 %v906, %v1078
  %v1080 = vpop.f32.mrb[0].mxu0
  %v1081 = vpop.f32.mrb[0].mxu0
  %v1082 = vadd.f32 %v906, %v1081
  %v1083 = vpop.f32.mrb[0].mxu0
  %1084 = vmatprep.mubr.bf16.mxu0 %v866
  %1085 = vmatmul.mubr.bf16.gmra.mrb[0].mxu0 %v865
  %v1086 = vpop.f32.mrb[0].mxu0
  %v1087 = vadd.f32 %v906, %v1086
  %v1088 = vpop.f32.mrb[0].mxu0
  %v1089 = vpop.f32.mrb[0].mxu0
  %v1090 = vadd.f32 %v906, %v1089
  %v1091 = vpop.f32.mrb[0].mxu0
  %1092 = vmatprep.mubr.bf16.mxu0 %v868
  %1093 = vmatmul.mubr.bf16.gmra.mrb[0].mxu0 %v867
  %v1094 = vpop.f32.mrb[0].mxu0
  %v1095 = vadd.f32 %v906, %v1094
  %v1096 = vpop.f32.mrb[0].mxu0
  %v1097 = vpop.f32.mrb[0].mxu0
  %v1098 = vadd.f32 %v906, %v1097
  %v1099 = vpop.f32.mrb[0].mxu0
  %1100 = vdwg.mxu0
  %v1101 = vmax.f32 %v1039, 0.0
  %v1102 = vmax.f32 %v1042, 0.0
  %v1103 = vmax.f32 %v1047, 0.0
  %v1104 = vmax.f32 %v1050, 0.0
  %v1105 = vmax.f32 %v1055, 0.0
  %v1106 = vmax.f32 %v1058, 0.0
  %v1107 = vmax.f32 %v1063, 0.0
  %v1108 = vmax.f32 %v1066, 0.0
  %v1109 = vmax.f32 %v1071, 0.0
  %v1110 = vmax.f32 %v1074, 0.0
  %v1111 = vmax.f32 %v1079, 0.0
  %v1112 = vmax.f32 %v1082, 0.0
  %v1113 = vmax.f32 %v1087, 0.0
  %v1114 = vmax.f32 %v1090, 0.0
  %v1115 = vmax.f32 %v1095, 0.0
  %v1116 = vmax.f32 %v1098, 0.0
  %1117 = vst [vmem:[%s7] sm:$0xff] %v1101
  %1118 = vst [vmem:[%s7 + $0x8] sm:$0xff] %v1102
  %1119 = vst [vmem:[%s7 + $0x10] sm:$0xff] %v1103
  %1120 = vst [vmem:[%s7 + $0x18] sm:$0xff] %v1104
  %1121 = vst [vmem:[%s7 + $0x20] sm:$0xff] %v1105
  %1122 = vst [vmem:[%s7 + $0x28] sm:$0xff] %v1106
  %1123 = vst [vmem:[%s7 + $0x30] sm:$0xff] %v1107
  %1124 = vst [vmem:[%s7 + $0x38] sm:$0xff] %v1108
  %1125 = vst [vmem:[%s7 + $0x40] sm:$0xff] %v1109
  %1126 = vst [vmem:[%s7 + $0x48] sm:$0xff] %v1110
  %1127 = vst [vmem:[%s7 + $0x50] sm:$0xff] %v1111
  %1128 = vst [vmem:[%s7 + $0x58] sm:$0xff] %v1112
  %1129 = vst [vmem:[%s7 + $0x60] sm:$0xff] %v1113
  %1130 = vst [vmem:[%s7 + $0x68] sm:$0xff] %v1114
  %1131 = vst [vmem:[%s7 + $0x70] sm:$0xff] %v1115
  %1132 = vst [vmem:[%s7 + $0x78] sm:$0xff] %v1116
  // Predicated region
  $region30: #{linear_skip_block.1} parent=0 // pred_check
    _
  $region31: #{linear_skip_block.1} parent=0 // pred_check_branch
    %1134 = sbr.rel (0) target = $region33
  $region32: #{linear_skip_block.1} parent=0 // pred_region
    _
  $region33: #{linear_skip_block.1} parent=0 // pred_fallthru
    _
  // Predicated region
  $region34: #{linear_skip_block.1} parent=0 // pred_check
    _
  $region35: #{linear_skip_block.1} parent=0 // pred_check_branch
    %1136 = sbr.rel (0) target = $region37
  $region36: #{linear_skip_block.1} parent=0 // pred_region
    _
  $region37: #{linear_skip_block.1} parent=0 // pred_fallthru
    _

</llo_original>
